<compile_context>
chip_gen: v7x
topology: tpu7x:2x2x1
jax: 0.10.0
libtpu: 0.0.40
codegen_flags: <defaults>
</compile_context>

<pallas_src>
import functools

import jax
import jax.numpy as jnp
from jax import lax
from jax.experimental import pallas as pl
from jax.experimental.pallas import tpu as pltpu

_INV_LN10 = 0.4342944819032518   # 1 / ln(10)
_LANES = 128                     # lane-dense last dim
_MAX_BLOCK_ROWS = 2048           # rows per grid step (multiple of 8/16/32)


def _loss_ce_sum_kernel(pred_ref, targ_ref, out_ref, acc_ref, *, valid_last_rows):
    """Accumulate sum of -(1-t)*log10(1-p) - t*log10(p) over the block grid."""
    i = pl.program_id(0)
    last = pl.num_programs(0) - 1

    @pl.when(i == 0)
    def _init():
        acc_ref[...] = jnp.zeros_like(acc_ref)

    # Upcast in VMEM (free on the VPU); inputs stream at their native width.
    p = pred_ref[...].astype(jnp.float32)
    t = targ_ref[...].astype(jnp.float32)
    # -(1-t)*log10(1-p) - t*log10(p), log10 scale folded into a single mul.
    elem = -((1.0 - t) * jnp.log(1.0 - p) + t * jnp.log(p)) * _INV_LN10

    def _partial(x):
        # Fold the (block_rows, 128) block into the small accumulator.
        if acc_ref.shape[0] == 8:
            return jnp.sum(x.reshape(-1, 8, _LANES), axis=0)      # VALU adds only
        return jnp.sum(x, axis=0, keepdims=True)                  # (1, 128)

    if valid_last_rows is None:
        # Every block is fully valid: lean steady-state loop, no mask ops.
        acc_ref[...] += _partial(elem)
    else:
        @pl.when(i != last)
        def _full():
            acc_ref[...] += _partial(elem)

        @pl.when(i == last)
        def _masked():
            # Only the final (partial) block needs masking; rows beyond the
            # valid range hold unspecified data and are zeroed before the add.
            r = lax.broadcasted_iota(jnp.int32, elem.shape, 0)
            acc_ref[...] += _partial(jnp.where(r < valid_last_rows, elem, 0.0))

    @pl.when(i == last)
    def _finalize():
        out_ref[...] = jnp.sum(acc_ref[...]).reshape(1, 1)


def _elementwise_loss(p, t):
    return -((1.0 - t) * jnp.log(1.0 - p) + t * jnp.log(p)) * _INV_LN10


def loss_crossentropy_pallas(pred, targ):
    """mean(-(1-targ)*log10(1-pred) - targ*log10(pred)) with one Pallas call."""
    assert pred.shape == targ.shape
    n = int(pred.size)
    if n == 0:
        return jnp.float32(jnp.nan)

    # Keep floating inputs in their native dtype (bf16 halves HBM traffic);
    # only non-float targets get a wrapper-side cast.
    if not jnp.issubdtype(pred.dtype, jnp.floating):
        pred = pred.astype(jnp.float32)
    if not jnp.issubdtype(targ.dtype, jnp.floating):
        targ = targ.astype(jnp.float32)

    p_flat = pred.reshape(-1)
    t_flat = targ.reshape(-1)

    rows = n // _LANES
    rem = n - rows * _LANES

    total = jnp.float32(0.0)

    if rows > 0:
        n_main = rows * _LANES
        # When n is a multiple of 128 (common case) these reshapes are free
        # bitcasts; only a sub-row remainder forces a prefix slice.
        p_main = p_flat if rem == 0 else p_flat[:n_main]
        t_main = t_flat if rem == 0 else t_flat[:n_main]
        p2d = p_main.reshape(rows, _LANES)
        t2d = t_main.reshape(rows, _LANES)

        block_rows = rows if rows <= _MAX_BLOCK_ROWS else _MAX_BLOCK_ROWS
        grid = pl.cdiv(rows, block_rows)
        tail_rows = rows - (grid - 1) * block_rows
        valid_last_rows = None if tail_rows == block_rows else tail_rows
        acc_rows = 8 if block_rows % 8 == 0 else 1

        itemsize = max(p2d.dtype.itemsize, t2d.dtype.itemsize)
        block_bytes = block_rows * _LANES * itemsize
        # 2 inputs x 2 pipeline buffers x block + scratch/headroom.
        vmem_limit = max(16 << 20, 4 * block_bytes + (2 << 20))
        vmem_limit = min(vmem_limit, 64 << 20)

        kernel = functools.partial(
            _loss_ce_sum_kernel, valid_last_rows=valid_last_rows)

        main_sum = pl.pallas_call(
            kernel,
            out_shape=jax.ShapeDtypeStruct((1, 1), jnp.float32),
            grid_spec=pltpu.PrefetchScalarGridSpec(
                num_scalar_prefetch=0,
                grid=(grid,),
                in_specs=[
                    pl.BlockSpec((block_rows, _LANES), lambda i: (i, 0)),
                    pl.BlockSpec((block_rows, _LANES), lambda i: (i, 0)),
                ],
                out_specs=pl.BlockSpec((1, 1), lambda i: (0, 0)),
                scratch_shapes=[pltpu.VMEM((acc_rows, _LANES), jnp.float32)],
            ),
            compiler_params=pltpu.CompilerParams(
                dimension_semantics=("arbitrary",),   # reduction axis
                vmem_limit_bytes=int(vmem_limit),
            ),
        )(p2d, t2d)[0, 0]
        total = total + main_sum

    if rem > 0:
        # Sub-row remainder (< 128 elements): negligible jnp work, no padding.
        p_tail = p_flat[rows * _LANES:].astype(jnp.float32)
        t_tail = t_flat[rows * _LANES:].astype(jnp.float32)
        total = total + jnp.sum(_elementwise_loss(p_tail, t_tail))

    return total / jnp.float32(n)


def _reference(pred, targ):
    a = -(1.0 - targ) * jnp.log10(1.0 - pred)
    b = -targ * jnp.log10(pred)
    return jnp.mean(a + b)


if __name__ == "__main__":
    key = jax.random.PRNGKey(0)
    k_p, k_t = jax.random.split(key)

    # Primary shape: n is a multiple of 128 -> zero extra HBM passes.
    shape = (2, 4, 16, 16)
    pred = jax.random.uniform(k_p, shape, jnp.float32, minval=0.05, maxval=0.95)
    targ = jax.random.bernoulli(k_t, 0.5, shape).astype(jnp.float32)

    loss_fn = jax.jit(loss_crossentropy_pallas)
    out = jax.block_until_ready(loss_fn(pred, targ))
    ref = _reference(pred, targ)
    assert out.shape == ()
    assert jnp.allclose(out, ref, atol=1e-6, rtol=1e-4), (out, ref)

    # Multi-step grid + partial last block (row mask) + sub-row jnp tail.
    shape2 = (5, 300, 200)
    pred2 = jax.random.uniform(k_p, shape2, jnp.float32, minval=0.05, maxval=0.95)
    targ2 = jax.random.bernoulli(k_t, 0.5, shape2).astype(jnp.float32)
    out2 = jax.block_until_ready(jax.jit(loss_crossentropy_pallas)(pred2, targ2))
    assert jnp.allclose(out2, _reference(pred2, targ2), atol=1e-6, rtol=1e-4)

    # Smaller than one 128-lane row: pure jnp fallback path.
    shape3 = (3, 5, 7)
    pred3 = jax.random.uniform(k_p, shape3, jnp.float32, minval=0.05, maxval=0.95)
    targ3 = jax.random.bernoulli(k_t, 0.5, shape3).astype(jnp.float32)
    out3 = jax.block_until_ready(jax.jit(loss_crossentropy_pallas)(pred3, targ3))
    assert jnp.allclose(out3, _reference(pred3, targ3), atol=1e-6, rtol=1e-4)

    print("KERNEL_OK")
</pallas_src>

<mosaic_0001>
module attributes {stable_mosaic.version = 11 : i64} {
  func.func @_loss_ce_sum_kernel(%arg0: i32, %arg1: memref<16x128xf32, #tpu.memory_space<vmem>>, %arg2: memref<16x128xf32, #tpu.memory_space<vmem>>, %arg3: memref<1x1xf32, #tpu.memory_space<vmem>>, %arg4: memref<8x128xf32, #tpu.memory_space<vmem>>) attributes {dimension_semantics = [#tpu.dimension_semantics<arbitrary>], iteration_bounds = array<i64: 1>, scalar_prefetch = 0 : i64, scratch_operands = 1 : i64, tpu.core_type = #tpu.core_type<tc>, window_params = [{transform_indices = @transform_0, window_bounds = array<i64: 16, 128>}, {transform_indices = @transform_1, window_bounds = array<i64: 16, 128>}, {pipeline_mode = #tpu.pipeline_mode<synchronous>, transform_indices = @transform_2, window_bounds = array<i64: 1, 1>}]} {
    %c0_i32 = arith.constant 0 : i32
    %0 = arith.cmpi eq, %arg0, %c0_i32 : i32
    %1 = arith.extui %0 : i1 to i32
    %c0_i32_0 = arith.constant 0 : i32
    %2 = arith.cmpi ne, %1, %c0_i32_0 : i32
    scf.if %2 {
      %cst_14 = arith.constant 0.000000e+00 : f32
      %26 = vector.broadcast %cst_14 : f32 to vector<8x128xf32>
      %c0_15 = arith.constant 0 : index
      %c0_16 = arith.constant 0 : index
      %27 = vector.load %arg4[%c0_15, %c0_16] : memref<8x128xf32, #tpu.memory_space<vmem>>, vector<8x128xf32>
      tpu.vector_store %arg4[%c0_15, %c0_16], %26 {strides = array<i32>} : memref<8x128xf32, #tpu.memory_space<vmem>>, vector<8x128xf32>,
    } else {
    }
    %c0 = arith.constant 0 : index
    %c0_1 = arith.constant 0 : index
    %3 = vector.load %arg1[%c0, %c0_1] : memref<16x128xf32, #tpu.memory_space<vmem>>, vector<16x128xf32>
    %c0_2 = arith.constant 0 : index
    %c0_3 = arith.constant 0 : index
    %4 = vector.load %arg2[%c0_2, %c0_3] : memref<16x128xf32, #tpu.memory_space<vmem>>, vector<16x128xf32>
    %cst = arith.constant 1.000000e+00 : f32
    %5 = vector.broadcast %cst : f32 to vector<16x128xf32>
    %6 = arith.subf %5, %4 : vector<16x128xf32>
    %cst_4 = arith.constant 1.000000e+00 : f32
    %7 = vector.broadcast %cst_4 : f32 to vector<16x128xf32>
    %8 = arith.subf %7, %3 : vector<16x128xf32>
    %9 = math.log %8 : vector<16x128xf32>
    %10 = arith.mulf %6, %9 : vector<16x128xf32>
    %11 = math.log %3 : vector<16x128xf32>
    %12 = arith.mulf %4, %11 : vector<16x128xf32>
    %13 = arith.addf %10, %12 : vector<16x128xf32>
    %cst_5 = arith.constant 0.000000e+00 : f32
    %14 = vector.broadcast %cst_5 : f32 to vector<16x128xf32>
    %15 = arith.subf %14, %13 : vector<16x128xf32>
    %cst_6 = arith.constant 0.434294492 : f32
    %16 = vector.broadcast %cst_6 : f32 to vector<16x128xf32>
    %17 = arith.mulf %15, %16 : vector<16x128xf32>
    %c0_7 = arith.constant 0 : index
    %c0_8 = arith.constant 0 : index
    %18 = vector.load %arg4[%c0_7, %c0_8] : memref<8x128xf32, #tpu.memory_space<vmem>>, vector<8x128xf32>
    %19 = vector.shape_cast %17 : vector<16x128xf32> to vector<2x8x128xf32>
    %cst_9 = arith.constant dense<0.000000e+00> : vector<8x128xf32>
    %20 = vector.multi_reduction <add>, %19, %cst_9 [0] : vector<2x8x128xf32> to vector<8x128xf32>
    %21 = arith.addf %18, %20 : vector<8x128xf32>
    %c0_10 = arith.constant 0 : index
    %c0_11 = arith.constant 0 : index
    %22 = vector.load %arg4[%c0_10, %c0_11] : memref<8x128xf32, #tpu.memory_space<vmem>>, vector<8x128xf32>
    tpu.vector_store %arg4[%c0_10, %c0_11], %21 {strides = array<i32>} : memref<8x128xf32, #tpu.memory_space<vmem>>, vector<8x128xf32>,
    %c0_i32_12 = arith.constant 0 : i32
    %23 = arith.cmpi eq, %arg0, %c0_i32_12 : i32
    %24 = arith.extui %23 : i1 to i32
    %c0_i32_13 = arith.constant 0 : i32
    %25 = arith.cmpi ne, %24, %c0_i32_13 : i32
    scf.if %25 {
      %c0_14 = arith.constant 0 : index
      %c0_15 = arith.constant 0 : index
      %26 = vector.load %arg4[%c0_14, %c0_15] : memref<8x128xf32, #tpu.memory_space<vmem>>, vector<8x128xf32>
      %27 = vector.shape_cast %26 : vector<8x128xf32> to vector<1x8x128xf32>
      %cst_16 = arith.constant dense<0.000000e+00> : vector<1xf32>
      %28 = vector.multi_reduction <add>, %27, %cst_16 [1, 2] : vector<1x8x128xf32> to vector<1xf32>
      %29 = vector.shape_cast %28 : vector<1xf32> to vector<1x1x1xf32>
      %30 = vector.extract %29[0, 0, 0] : f32 from vector<1x1x1xf32>
      %31 = vector.broadcast %30 : f32 to vector<1x1xf32>
      %c0_17 = arith.constant 0 : index
      %c0_18 = arith.constant 0 : index
      %32 = vector.load %arg3[%c0_17, %c0_18] : memref<1x1xf32, #tpu.memory_space<vmem>>, vector<1x1xf32>
      tpu.vector_store %arg3[%c0_17, %c0_18], %31 {strides = array<i32>} : memref<1x1xf32, #tpu.memory_space<vmem>>, vector<1x1xf32>,
    } else {
    }
    return
  }
  func.func @transform_0(%arg0: i32) -> (i32, i32) {
    %c0_i32 = arith.constant 0 : i32
    %c0_i32_0 = arith.constant 0 : i32
    return %arg0, %c0_i32 : i32, i32
  }
  func.func @transform_1(%arg0: i32) -> (i32, i32) {
    %c0_i32 = arith.constant 0 : i32
    %c0_i32_0 = arith.constant 0 : i32
    return %arg0, %c0_i32 : i32, i32
  }
  func.func @transform_2(%arg0: i32) -> (i32, i32) {
    %c0_i32 = arith.constant 0 : i32
    %c0_i32_0 = arith.constant 0 : i32
    %c0_i32_1 = arith.constant 0 : i32
    return %c0_i32, %c0_i32_0 : i32, i32
  }
}

</mosaic_0001>

<llo_original>
// kernel: loss_crossentropy_pallas.1
$region0: #{loss_crossentropy_pallas.1}
  #allocation0 [shape = 'u32[]', space=smem, size = 0x4, offset = 0x4, fixed_abs, tag = 'smem constant byte address 0x4 - core index']
  #allocation1 [shape = 'u32[144,128]{1,0:T(1,128)}', space=vmem, size = 0x12000, scoped, tag = 'internal scratch']
  #allocation2 [shape = 'f32[8,128]{1,0:T(8,128)}', space=vmem, size = 0x1000, scoped, tag = 'scratch operand']
  %s0 = inlined_call_operand.vmem [shape: f32[16,128], index: 0, kind: input, shape index: {}]
  %s1 = inlined_call_operand.vmem [shape: f32[16,128], index: 1, kind: input, shape index: {}]
  %s2 = inlined_call_operand.hbm [shape: f32[1,1], index: 2, kind: output, shape index: {}]
  %s3 = sld [smem:[#allocation0]]
  $region26: #{loss_crossentropy_pallas.1} parent=0
    _
  %s5 = ssub.s32 1, %s3
  %s6 = scalar_select 0, %s5, %s3
  $region1: #{loss_crossentropy_pallas.1} parent=0
    #allocation3 [shape = 'u8[512]{0}', space=vmem, size = 0x400, scoped, tag = 'output window, operand 0, single buffered']
    #allocation4 [shape = 's32[1]{0}', space=sflag, size = 0x4, scoped, tag = 'scoped memory for loss_crossentropy_pallas.1']
    %7 = vsyncpa [#allocation4], 0
    // Predicated region
    $region2: #{loss_crossentropy_pallas.1} parent=1 // pred_check
      _
    $region3: #{loss_crossentropy_pallas.1} parent=1 // pred_check_branch
      %9 = sbr.rel (0) target = $region5
    $region4: #{loss_crossentropy_pallas.1} parent=1 // pred_region
      _
    $region5: #{loss_crossentropy_pallas.1} parent=1 // pred_fallthru
      _
    // Predicated region
    $region6: #{loss_crossentropy_pallas.1} parent=1 // pred_check
      _
    $region7: #{loss_crossentropy_pallas.1} parent=1 // pred_check_branch
      %11 = sbr.rel (0) target = $region9
    $region8: #{loss_crossentropy_pallas.1} parent=1 // pred_region
      _
    $region9: #{loss_crossentropy_pallas.1} parent=1 // pred_fallthru
      _
    %p12 = scmp.eq.s32.totalorder 0, 0
    // Predicated region
    $region10: #{loss_crossentropy_pallas.1} parent=1 // pred_check
      %p13 = pneg %p12
    $region11: #{loss_crossentropy_pallas.1} parent=1 // pred_check_branch
      %15 = sbr.rel (%p13) target = $region13
    $region12: #{loss_crossentropy_pallas.1} parent=1 // pred_region
      %16 = vst [vmem:[#allocation2] sm:$0xff] 0.0
    $region13: #{loss_crossentropy_pallas.1} parent=1 // pred_fallthru
      _
    %v17 = vld [vmem:[%s0] sm:$0xff]
    %v18 = vld [vmem:[%s0 + $0x8] sm:$0xff]
    %v19 = vld [vmem:[%s1] sm:$0xff]
    %v20 = vld [vmem:[%s1 + $0x8] sm:$0xff]
    %v21 = vsub.f32 1.0, %v19
    %v22 = vsub.f32 1.0, %v20
    %v23 = vsub.f32 1.0, %v17
    %v24 = vsub.f32 1.0, %v18
    %v25 = vlog2.pop %v23
    %v26 = vmul.f32 %v25, 0.6931472
    %v27 = vlog2.pop %v24
    %v28 = vmul.f32 %v27, 0.6931472
    %v29 = vmul.f32 %v21, %v26
    %v30 = vmul.f32 %v22, %v28
    %v31 = vlog2.pop %v17
    %v32 = vmul.f32 %v31, 0.6931472
    %v33 = vlog2.pop %v18
    %v34 = vmul.f32 %v33, 0.6931472
    %v35 = vmul.f32 %v19, %v32
    %v36 = vmul.f32 %v20, %v34
    %v37 = vadd.f32 %v29, %v35
    %v38 = vadd.f32 %v30, %v36
    %v39 = vsub.f32 0.0, %v37
    %v40 = vsub.f32 0.0, %v38
    %v41 = vmul.f32 %v39, 0.4342945
    %v42 = vmul.f32 %v40, 0.4342945
    %v43 = vld [vmem:[#allocation2] sm:$0xff]
    %v44 = vadd.f32 %v41, %v42
    %v45 = vadd.f32 %v43, %v44
    %46 = vst [vmem:[#allocation2] sm:$0xff] %v45
    // Predicated region
    $region14: #{loss_crossentropy_pallas.1} parent=1 // pred_check
      %p47 = pneg %p12
    $region15: #{loss_crossentropy_pallas.1} parent=1 // pred_check_branch
      %49 = sbr.rel (%p47) target = $region17
    $region16: #{loss_crossentropy_pallas.1} parent=1 // pred_region
      %v50 = vld [vmem:[#allocation2] sm:$0xff]
      %51 = vadd.xlane.f32.xlu0 %v50
      %v52 = vpop.xlane.xlu0 %51
      %v53 = vrot.slane %v52, 4
      %v54 = vadd.f32 %v52, %v53
      %v55 = vrot.slane %v54, 2
      %v56 = vadd.f32 %v54, %v55
      %v57 = vrot.slane %v56, 1
      %v58 = vadd.f32 %v56, %v57
      %s59 = vtos %v58
      %v60 = vstv %s59
      %vm61 = vcmask 0
      %62 = vst.msk [vmem:[#allocation3] sm:$0x1] %vm61, %v60
    $region17: #{loss_crossentropy_pallas.1} parent=1 // pred_fallthru
      _
    // Predicated region
    $region18: #{loss_crossentropy_pallas.1} parent=1 // pred_check
      _
    $region19: #{loss_crossentropy_pallas.1} parent=1 // pred_check_branch
      %64 = sbr.rel (0) target = $region21
    $region20: #{loss_crossentropy_pallas.1} parent=1 // pred_region
      %s66 = ssub.s32 16, 16
      %67 = vsyncadd [#allocation4], %s66
      %s69 = sshll.u32 [#allocation3], 4
      %s70 = int_to_ptr.vmem [resolvable:$true] %s69
      %72 = dma.vmem_to_hbm [thread:$0]  %s70, 16, %s2, [#allocation4]
    $region21: #{loss_crossentropy_pallas.1} parent=1 // pred_fallthru
      _
    // Predicated region
    $region22: #{loss_crossentropy_pallas.1} parent=1 // pred_check
      _
    $region23: #{loss_crossentropy_pallas.1} parent=1 // pred_check_branch
      %74 = sbr.rel (0) target = $region25
    $region24: #{loss_crossentropy_pallas.1} parent=1 // pred_region
      %75 = dma.done [#allocation4], 16
    $region25: #{loss_crossentropy_pallas.1} parent=1 // pred_fallthru
      _
    %76 = vsyncpa [#allocation4], 1

</llo_original>
